<compile_context>
chip_gen: v7x
topology: tpu7x:2x2x1
jax: 0.10.0
libtpu: 0.0.40
codegen_flags: <defaults>
</compile_context>

<pallas_src>
import jax
import jax.numpy as jnp
from jax.experimental import pallas as pl
from jax.experimental.pallas import tpu as pltpu


# ----------------------------------------------------------------------------
# helpers
# ----------------------------------------------------------------------------
def _round_up(a, b):
    return -(-a // b) * b


def _cdiv(a, b):
    return -(-a // b)


def _vmem_budget_bytes():
    try:
        cap = int(pltpu.get_tpu_info().vmem_capacity_bytes)
    except Exception:
        cap = 64 << 20  # conservative (v7x-sized) fallback
    # ~46 MiB on v7x (64 MiB physical), ~92 MiB on v5e/v6e (128 MiB):
    # leaves Mosaic internal-scratch headroom on v7x, doesn't idle half of
    # v5e/v6e's VMEM (v5e's 16 MiB default scoped limit is overridden below).
    return int(cap * 0.72)


# ----------------------------------------------------------------------------
# kernels
# ----------------------------------------------------------------------------
def _qkv_kernel_fullk(x_ref, wq_ref, wkv_ref, bq_ref, bkv_ref, q_ref, kv_ref):
    # x: (tm, dim) storage dtype; wq: (dim, qk); wkv: (dim, kv); b*: (1, n) f32
    x = x_ref[...].astype(wq_ref.dtype)  # in-kernel cast, hidden under the MXU
    q = jnp.dot(x, wq_ref[...], preferred_element_type=jnp.float32)
    kv = jnp.dot(x, wkv_ref[...], preferred_element_type=jnp.float32)
    q_ref[...] = (q + bq_ref[...]).astype(q_ref.dtype)
    kv_ref[...] = (kv + bkv_ref[...]).astype(kv_ref.dtype)


def _qkv_kernel_ktiled(x_ref, wq_ref, wkv_ref, bq_ref, bkv_ref,
                       q_ref, kv_ref, accq_ref, acckv_ref):
    k = pl.program_id(1)

    @pl.when(k == 0)
    def _init():
        accq_ref[...] = jnp.zeros_like(accq_ref)
        acckv_ref[...] = jnp.zeros_like(acckv_ref)

    x = x_ref[...].astype(wq_ref.dtype)
    accq_ref[...] += jnp.dot(x, wq_ref[...], preferred_element_type=jnp.float32)
    acckv_ref[...] += jnp.dot(x, wkv_ref[...], preferred_element_type=jnp.float32)

    @pl.when(k == pl.num_programs(1) - 1)
    def _finalize():
        q_ref[...] = (accq_ref[...] + bq_ref[...]).astype(q_ref.dtype)
        kv_ref[...] = (acckv_ref[...] + bkv_ref[...]).astype(kv_ref.dtype)


# ----------------------------------------------------------------------------
# parameter packing (one-time; removes all per-call weight/bias HBM passes)
# ----------------------------------------------------------------------------
def init_qkv_linear_params(key, dim, qk_dim, dtype=jnp.float32):
    """PyTorch-style init for nn.Linear(dim, 2*qk_dim + dim).

    Returns (weight, bias) in torch layout: weight (out_dim, dim), bias (out_dim,).
    """
    out_dim = qk_dim + qk_dim + dim
    kw, kb = jax.random.split(key)
    bound = 1.0 / (dim ** 0.5)  # kaiming_uniform_(a=sqrt(5)) => 1/sqrt(fan_in)
    weight = jax.random.uniform(kw, (out_dim, dim), dtype, -bound, bound)
    bias = jax.random.uniform(kb, (out_dim,), dtype, -bound, bound)
    return weight, bias


def pack_qkv_params(weight, bias, qk_dim, *, param_dtype=jnp.bfloat16):
    """Pack torch-layout params for the kernel (do this once, outside the hot path).

    weight: (out_dim, dim), bias: (out_dim,), out_dim = 2*qk_dim + dim.
    Returns (wq_t, wkv_t, bq, bkv): pre-split, pre-transposed, pre-cast
    (bf16 weights by default; bias kept f32 for the f32 accumulator add).
    """
    out_dim, dim = weight.shape
    kv_dim = out_dim - qk_dim
    wq_t = jnp.asarray(weight[:qk_dim, :].T, param_dtype)    # (dim, qk_dim)
    wkv_t = jnp.asarray(weight[qk_dim:, :].T, param_dtype)   # (dim, kv_dim)
    bq = jnp.asarray(bias[:qk_dim], jnp.float32).reshape(1, qk_dim)
    bkv = jnp.asarray(bias[qk_dim:], jnp.float32).reshape(1, kv_dim)
    return wq_t, wkv_t, bq, bkv


# ----------------------------------------------------------------------------
# forward
# ----------------------------------------------------------------------------
def qkv_linear(x, wq_t, wkv_t, bq, bkv, *, tile_m=1024, block_k=None):
    """QKVLinear forward: (q, kv) = split(x @ W^T + b, [qk_dim, qk_dim+dim], -1).

    x:     (..., dim) (any float dtype; cast to the weight dtype in-kernel)
    wq_t:  (dim, qk_dim)        pre-transposed q slab of W
    wkv_t: (dim, qk_dim + dim)  pre-transposed kv slab of W
    bq:    (1, qk_dim) f32      bkv: (1, qk_dim + dim) f32
    block_k: optional K-tile override (must divide dim; mainly a testing hook).
    """
    dim, qk_dim = wq_t.shape
    dim2, kv_dim = wkv_t.shape
    assert dim == dim2 and x.shape[-1] == dim
    lead = x.shape[:-1]
    out_dtype = x.dtype

    x2d = x.reshape(-1, dim)
    M = x2d.shape[0]
    if M == 0:  # empty leading dims
        return (jnp.zeros((*lead, qk_dim), out_dtype),
                jnp.zeros((*lead, kv_dim), out_dtype))

    x_isz = jnp.dtype(x2d.dtype).itemsize
    w_isz = jnp.dtype(wq_t.dtype).itemsize
    o_isz = jnp.dtype(out_dtype).itemsize
    n_out = qk_dim + kv_dim

    budget = _vmem_budget_bytes()

    # ---- K (dim) tile: full K unless the double-buffered weight slab alone
    #      would eat more than half the budget. K tiles must divide dim and be
    #      lane-aligned (128) so the reduction needs no masking. ----
    tk = dim
    if block_k is not None:
        assert dim % block_k == 0 and (block_k % 128 == 0 or block_k == dim)
        tk = block_k
    elif 2 * dim * n_out * w_isz > budget // 2:
        for cand in (2048, 1024, 512, 256, 128):
            if dim % cand == 0 and 2 * cand * n_out * w_isz <= budget // 2:
                tk = cand
                break
        # TODO(synk): huge dim not divisible by a 128-multiple stays full-K;
        #             a masked K tile would be needed to cover that corner.
    nk = dim // tk

    # ---- M tile: sublane-rounded for the narrowest dtype in play, >= 2 blocks
    #      on the parallel axis (v7x's two TensorCores / pipelining overlap),
    #      then shrink (re-rounded) until the VMEM budget is met. ----
    sub = max(8, 32 // min(x_isz, o_isz))          # 8 f32 / 16 bf16 / 32 int8
    tm = _round_up(min(tile_m, _round_up(M, sub)), sub)
    if M > sub and _cdiv(M, tm) < 2:
        tm = _round_up(_cdiv(M, 2), sub)

    def vmem_need(tm_):
        buf = 2 * (tm_ * tk * x_isz                  # x tile (storage dtype)
                   + tk * n_out * w_isz              # wq + wkv tiles
                   + n_out * 4                       # bq + bkv
                   + tm_ * n_out * o_isz)            # q + kv output tiles
        interm = tm_ * tk * w_isz + tm_ * n_out * 4  # x-cast + f32 dot/bias
        scratch = tm_ * n_out * 4 if nk > 1 else 0   # f32 accumulators
        return buf + interm + scratch

    while tm > sub and vmem_need(tm) > budget:
        tm = _round_up(tm // 2, sub)

    ni = _cdiv(M, tm)
    vmem_limit = int(min(budget, max(vmem_need(tm) + (8 << 20), 32 << 20)))

    out_shape = (jax.ShapeDtypeStruct((M, qk_dim), out_dtype),
                 jax.ShapeDtypeStruct((M, kv_dim), out_dtype))

    if nk == 1:
        # Weight / bias block indices are constant -> DMA'd once for the call.
        grid_spec = pltpu.PrefetchScalarGridSpec(
            num_scalar_prefetch=0,
            grid=(ni,),
            in_specs=[
                pl.BlockSpec((tm, dim), lambda i: (i, 0)),
                pl.BlockSpec((dim, qk_dim), lambda i: (0, 0)),
                pl.BlockSpec((dim, kv_dim), lambda i: (0, 0)),
                pl.BlockSpec((1, qk_dim), lambda i: (0, 0)),
                pl.BlockSpec((1, kv_dim), lambda i: (0, 0)),
            ],
            out_specs=[
                pl.BlockSpec((tm, qk_dim), lambda i: (i, 0)),
                pl.BlockSpec((tm, kv_dim), lambda i: (i, 0)),
            ],
        )
        kernel = _qkv_kernel_fullk
        dims = ("parallel",)
    else:
        grid_spec = pltpu.PrefetchScalarGridSpec(
            num_scalar_prefetch=0,
            grid=(ni, nk),                            # K innermost, reduction
            in_specs=[
                pl.BlockSpec((tm, tk), lambda i, k: (i, k)),
                pl.BlockSpec((tk, qk_dim), lambda i, k: (k, 0)),
                pl.BlockSpec((tk, kv_dim), lambda i, k: (k, 0)),
                pl.BlockSpec((1, qk_dim), lambda i, k: (0, 0)),
                pl.BlockSpec((1, kv_dim), lambda i, k: (0, 0)),
            ],
            out_specs=[
                pl.BlockSpec((tm, qk_dim), lambda i, k: (i, 0)),
                pl.BlockSpec((tm, kv_dim), lambda i, k: (i, 0)),
            ],
            scratch_shapes=[pltpu.VMEM((tm, qk_dim), jnp.float32),
                            pltpu.VMEM((tm, kv_dim), jnp.float32)],
        )
        kernel = _qkv_kernel_ktiled
        dims = ("parallel", "arbitrary")

    q, kv = pl.pallas_call(
        kernel,
        out_shape=out_shape,
        grid_spec=grid_spec,
        compiler_params=pltpu.CompilerParams(
            dimension_semantics=dims,
            vmem_limit_bytes=vmem_limit),
    )(x2d, wq_t, wkv_t, bq, bkv)

    return q.reshape(*lead, qk_dim), kv.reshape(*lead, kv_dim)


# ----------------------------------------------------------------------------
# self-test
# ----------------------------------------------------------------------------
if __name__ == "__main__":
    key = jax.random.PRNGKey(0)
    k1, k2, k3, k4, k5 = jax.random.split(key, 5)

    def torch_ref(x, weight, bias, qk_dim):
        y = x @ weight.T + bias
        return y[..., :qk_dim], y[..., qk_dim:]

    def check(a, b, name, atol=3e-2, rtol=3e-2):
        # bf16 MXU operands (and TPU default-precision f32 matmuls in the
        # reference) => bf16-level tolerances, not 1e-5.
        assert a.shape == b.shape, (name, a.shape, b.shape)
        ok = jnp.allclose(a.astype(jnp.float32), b.astype(jnp.float32),
                          atol=atol, rtol=rtol)
        assert bool(ok), name

    # --- Test 1: default bf16 compute path, small shapes ---------------------
    B, N, dim, qk_dim = 2, 64, 32, 32
    weight, bias = init_qkv_linear_params(k1, dim, qk_dim)
    params = pack_qkv_params(weight, bias, qk_dim)            # bf16 weights
    x = jax.random.normal(k2, (B, N, dim), jnp.float32)
    q, kv = qkv_linear(x, *params)
    q, kv = jax.block_until_ready(q), jax.block_until_ready(kv)
    q_ref, kv_ref = torch_ref(x, weight, bias, qk_dim)
    assert q.shape == (B, N, qk_dim) and kv.shape == (B, N, qk_dim + dim)
    check(q, q_ref, "test1 q")
    check(kv, kv_ref, "test1 kv")

    # --- Test 2: ragged row count (non-divisible M), f32 weight storage ------
    N2 = 50
    params_f32 = pack_qkv_params(weight, bias, qk_dim, param_dtype=jnp.float32)
    x2 = jax.random.normal(k3, (B, N2, dim), jnp.float32)
    q2, kv2 = qkv_linear(x2, *params_f32)
    q2, kv2 = jax.block_until_ready(q2), jax.block_until_ready(kv2)
    q2_ref, kv2_ref = torch_ref(x2, weight, bias, qk_dim)
    assert q2.shape == (B, N2, qk_dim) and kv2.shape == (B, N2, qk_dim + dim)
    check(q2, q2_ref, "test2 q")
    check(kv2, kv2_ref, "test2 kv")

    # --- Test 3: K-tiled path (f32 accumulator + pl.when init/finalize) ------
    dim3, qk3 = 256, 64
    w3, b3 = init_qkv_linear_params(k4, dim3, qk3)
    p3 = pack_qkv_params(w3, b3, qk3)
    x3 = jax.random.normal(k5, (2, 16, dim3), jnp.float32)
    q3, kv3 = qkv_linear(x3, *p3, block_k=128)
    q3, kv3 = jax.block_until_ready(q3), jax.block_until_ready(kv3)
    q3_ref, kv3_ref = torch_ref(x3, w3, b3, qk3)
    assert q3.shape == (2, 16, qk3) and kv3.shape == (2, 16, qk3 + dim3)
    check(q3, q3_ref, "test3 q")
    check(kv3, kv3_ref, "test3 kv")

    print("KERNEL_OK")
</pallas_src>

<mosaic_0001>
module attributes {stable_mosaic.version = 11 : i64} {
  func.func @_qkv_kernel_fullk(%arg0: i32, %arg1: memref<64x32xf32, #tpu.memory_space<vmem>>, %arg2: memref<32x32xbf16, #tpu.memory_space<vmem>>, %arg3: memref<32x64xbf16, #tpu.memory_space<vmem>>, %arg4: memref<1x32xf32, #tpu.memory_space<vmem>>, %arg5: memref<1x64xf32, #tpu.memory_space<vmem>>, %arg6: memref<64x32xf32, #tpu.memory_space<vmem>>, %arg7: memref<64x64xf32, #tpu.memory_space<vmem>>) attributes {dimension_semantics = [#tpu.dimension_semantics<parallel>], iteration_bounds = array<i64: 2>, scalar_prefetch = 0 : i64, scratch_operands = 0 : i64, tpu.core_type = #tpu.core_type<tc>, window_params = [{transform_indices = @transform_0, window_bounds = array<i64: 64, 32>}, {pipeline_mode = #tpu.pipeline_mode<synchronous>, transform_indices = @transform_1, window_bounds = array<i64: 32, 32>}, {pipeline_mode = #tpu.pipeline_mode<synchronous>, transform_indices = @transform_2, window_bounds = array<i64: 32, 64>}, {pipeline_mode = #tpu.pipeline_mode<synchronous>, transform_indices = @transform_3, window_bounds = array<i64: 1, 32>}, {pipeline_mode = #tpu.pipeline_mode<synchronous>, transform_indices = @transform_4, window_bounds = array<i64: 1, 64>}, {transform_indices = @transform_5, window_bounds = array<i64: 64, 32>}, {transform_indices = @transform_6, window_bounds = array<i64: 64, 64>}]} {
    %c0 = arith.constant 0 : index
    %c0_0 = arith.constant 0 : index
    %0 = vector.load %arg1[%c0, %c0_0] : memref<64x32xf32, #tpu.memory_space<vmem>>, vector<64x32xf32>
    %1 = arith.truncf %0 : vector<64x32xf32> to vector<64x32xbf16>
    %c0_1 = arith.constant 0 : index
    %c0_2 = arith.constant 0 : index
    %2 = vector.load %arg2[%c0_1, %c0_2] : memref<32x32xbf16, #tpu.memory_space<vmem>>, vector<32x32xbf16>
    %cst = arith.constant dense<0.000000e+00> : vector<64x32xf32>
    %3 = tpu.matmul %1, %2, %cst {dimension_numbers = #tpu.dot_dimension_numbers<[1], [0], [0], [1], [0, 0, 1, 1], [], []>} : vector<64x32xbf16>, vector<32x32xbf16>, vector<64x32xf32> -> vector<64x32xf32>
    %c0_3 = arith.constant 0 : index
    %c0_4 = arith.constant 0 : index
    %4 = vector.load %arg3[%c0_3, %c0_4] : memref<32x64xbf16, #tpu.memory_space<vmem>>, vector<32x64xbf16>
    %cst_5 = arith.constant dense<0.000000e+00> : vector<64x64xf32>
    %5 = tpu.matmul %1, %4, %cst_5 {dimension_numbers = #tpu.dot_dimension_numbers<[1], [0], [0], [1], [0, 0, 1, 1], [], []>} : vector<64x32xbf16>, vector<32x64xbf16>, vector<64x64xf32> -> vector<64x64xf32>
    %c0_6 = arith.constant 0 : index
    %c0_7 = arith.constant 0 : index
    %6 = vector.load %arg4[%c0_6, %c0_7] : memref<1x32xf32, #tpu.memory_space<vmem>>, vector<1x32xf32>
    %7 = vector.broadcast %6 : vector<1x32xf32> to vector<64x32xf32>
    %8 = arith.addf %3, %7 : vector<64x32xf32>
    %c0_8 = arith.constant 0 : index
    %c0_9 = arith.constant 0 : index
    %9 = vector.load %arg6[%c0_8, %c0_9] : memref<64x32xf32, #tpu.memory_space<vmem>>, vector<64x32xf32>
    tpu.vector_store %arg6[%c0_8, %c0_9], %8 {strides = array<i32>} : memref<64x32xf32, #tpu.memory_space<vmem>>, vector<64x32xf32>,
    %c0_10 = arith.constant 0 : index
    %c0_11 = arith.constant 0 : index
    %10 = vector.load %arg5[%c0_10, %c0_11] : memref<1x64xf32, #tpu.memory_space<vmem>>, vector<1x64xf32>
    %11 = vector.broadcast %10 : vector<1x64xf32> to vector<64x64xf32>
    %12 = arith.addf %5, %11 : vector<64x64xf32>
    %c0_12 = arith.constant 0 : index
    %c0_13 = arith.constant 0 : index
    %13 = vector.load %arg7[%c0_12, %c0_13] : memref<64x64xf32, #tpu.memory_space<vmem>>, vector<64x64xf32>
    tpu.vector_store %arg7[%c0_12, %c0_13], %12 {strides = array<i32>} : memref<64x64xf32, #tpu.memory_space<vmem>>, vector<64x64xf32>,
    return
  }
  func.func @transform_0(%arg0: i32) -> (i32, i32) {
    %c0_i32 = arith.constant 0 : i32
    %c0_i32_0 = arith.constant 0 : i32
    return %arg0, %c0_i32 : i32, i32
  }
  func.func @transform_1(%arg0: i32) -> (i32, i32) {
    %c0_i32 = arith.constant 0 : i32
    %c0_i32_0 = arith.constant 0 : i32
    %c0_i32_1 = arith.constant 0 : i32
    return %c0_i32, %c0_i32_0 : i32, i32
  }
  func.func @transform_2(%arg0: i32) -> (i32, i32) {
    %c0_i32 = arith.constant 0 : i32
    %c0_i32_0 = arith.constant 0 : i32
    %c0_i32_1 = arith.constant 0 : i32
    return %c0_i32, %c0_i32_0 : i32, i32
  }
  func.func @transform_3(%arg0: i32) -> (i32, i32) {
    %c0_i32 = arith.constant 0 : i32
    %c0_i32_0 = arith.constant 0 : i32
    %c0_i32_1 = arith.constant 0 : i32
    return %c0_i32, %c0_i32_0 : i32, i32
  }
  func.func @transform_4(%arg0: i32) -> (i32, i32) {
    %c0_i32 = arith.constant 0 : i32
    %c0_i32_0 = arith.constant 0 : i32
    %c0_i32_1 = arith.constant 0 : i32
    return %c0_i32, %c0_i32_0 : i32, i32
  }
  func.func @transform_5(%arg0: i32) -> (i32, i32) {
    %c0_i32 = arith.constant 0 : i32
    %c0_i32_0 = arith.constant 0 : i32
    return %arg0, %c0_i32 : i32, i32
  }
  func.func @transform_6(%arg0: i32) -> (i32, i32) {
    %c0_i32 = arith.constant 0 : i32
    %c0_i32_0 = arith.constant 0 : i32
    return %arg0, %c0_i32 : i32, i32
  }
}

</mosaic_0001>

<llo_original>
// kernel: tpu_custom_call.1
$region0: #{tpu_custom_call.1}
  #allocation0 [shape = 'u32[]', space=smem, size = 0x4, offset = 0x4, fixed_abs, tag = 'smem constant byte address 0x4 - core index']
  #allocation1 [shape = 'u32[144,128]{1,0:T(1,128)}', space=vmem, size = 0x12000, scoped, tag = 'internal scratch']
  %s0 = inlined_call_operand.vmem [shape: f32[128,32], index: 0, kind: input, shape index: {}]
  %s1 = inlined_call_operand.vmem [shape: bf16[32,32], index: 1, kind: input, shape index: {}]
  %s2 = inlined_call_operand.vmem [shape: bf16[32,64], index: 2, kind: input, shape index: {}]
  %s3 = inlined_call_operand.vmem [shape: f32[1,32], index: 3, kind: input, shape index: {}]
  %s4 = inlined_call_operand.vmem [shape: f32[1,64], index: 4, kind: input, shape index: {}]
  %s5 = inlined_call_operand.vmem [shape: f32[128,32], index: 5, kind: output, shape index: {0}]
  %s6 = inlined_call_operand.vmem [shape: f32[128,64], index: 6, kind: output, shape index: {1}]
  %7 = xla_tuple %s5, %s6
  %s8 = sld [smem:[#allocation0]]
  $region61: #{tpu_custom_call.1} parent=0
    _
  %s10 = ssub.s32 1, %s8
  %s11 = scalar_select 0, %s10, %s8
  loop: start=0, step=1, limit=4
  $region2: #{tpu_custom_call.1} parent=0 // loop_pre_header
    _
  $region3: #{tpu_custom_call.1} parent=0 // loop_header
    %s13 = sphi 0, %s17
    %p14 = scmp.ge.s32.totalorder %s13, 4
    %s23 = sphi 0, %s25
    %s26 = sphi 0, %s23
    %s27 = sphi 0, %s26
    %s43 = sphi 0, %s27
    %s47 = sphi 0, %s47
    %s49 = sphi 0, %s47
    %s50 = sphi 0, %s49
    %s64 = sphi 0, %s50
    %s68 = sphi 0, %s68
    %s70 = sphi 0, %s68
    %s71 = sphi 0, %s70
    %s85 = sphi 0, %s71
    %s89 = sphi 0, %s89
    %s91 = sphi 0, %s89
    %s92 = sphi 0, %s91
    %s106 = sphi 0, %s92
    %s110 = sphi 0, %s110
    %s112 = sphi 0, %s110
    %s113 = sphi 0, %s112
    %s127 = sphi 0, %s113
    %s133 = sphi 0, %s135
    %s136 = sphi 0, %s133
    %s137 = sphi 0, %s136
    %s153 = sphi 0, %s137
    %s159 = sphi 0, %s161
    %s162 = sphi 0, %s159
    %s163 = sphi 0, %s162
    %s179 = sphi 0, %s163
  $region4: #{tpu_custom_call.1} parent=0 // loop_header_branch
    %16 = sbr.rel (%p14) target = $region8
  $region5: #{tpu_custom_call.1} parent=0 // loop_body
    %s18 = ssub.s32 %s13, 1
    %s19 = ssub.s32 %s13, 2
    %s20 = sadd.s32 %s13, 1
    %s21 = ssub.s32 %s13, %s20
    %p22 = scmp.eq.s32.totalorder %s21, 0
    %s24 = sadd.s32 %s23, 1
    %s25 = scalar_select %p22, %s23, %s24
    %p28 = pneg %p22
    %p29 = scmp.eq.s32.totalorder %s13, 1
    %p30 = por %p28, %p29
    %p31 = scmp.ne.s32.totalorder %s23, %s26
    %p32 = scmp.eq.s32.totalorder %s13, 0
    %p33 = por %p31, %p32
    %p34 = scmp.ne.s32.totalorder %s23, %s26
    %p35 = scmp.eq.s32.totalorder %s18, 1
    %p36 = por %p34, %p35
    %p37 = scmp.ne.s32.totalorder %s26, %s27
    %p38 = scmp.eq.s32.totalorder %s18, 0
    %p39 = por %p37, %p38
    %p40 = scmp.ne.s32.totalorder %s26, %s27
    %p41 = scmp.eq.s32.totalorder %s19, 1
    %p42 = por %p40, %p41
    %p44 = scmp.ne.s32.totalorder %s27, %s43
    %p45 = scmp.eq.s32.totalorder %s19, 0
    %p46 = por %p44, %p45
    %s48 = sadd.s32 %s47, 1
    %p51 = scmp.eq.s32.totalorder %s13, 1
    %p52 = scmp.ne.s32.totalorder %s47, %s49
    %p53 = scmp.eq.s32.totalorder %s13, 0
    %p54 = por %p52, %p53
    %p55 = scmp.ne.s32.totalorder %s47, %s49
    %p56 = scmp.eq.s32.totalorder %s18, 1
    %p57 = por %p55, %p56
    %p58 = scmp.ne.s32.totalorder %s49, %s50
    %p59 = scmp.eq.s32.totalorder %s18, 0
    %p60 = por %p58, %p59
    %p61 = scmp.ne.s32.totalorder %s49, %s50
    %p62 = scmp.eq.s32.totalorder %s19, 1
    %p63 = por %p61, %p62
    %p65 = scmp.ne.s32.totalorder %s50, %s64
    %p66 = scmp.eq.s32.totalorder %s19, 0
    %p67 = por %p65, %p66
    %s69 = sadd.s32 %s68, 1
    %p72 = scmp.eq.s32.totalorder %s13, 1
    %p73 = scmp.ne.s32.totalorder %s68, %s70
    %p74 = scmp.eq.s32.totalorder %s13, 0
    %p75 = por %p73, %p74
    %p76 = scmp.ne.s32.totalorder %s68, %s70
    %p77 = scmp.eq.s32.totalorder %s18, 1
    %p78 = por %p76, %p77
    %p79 = scmp.ne.s32.totalorder %s70, %s71
    %p80 = scmp.eq.s32.totalorder %s18, 0
    %p81 = por %p79, %p80
    %p82 = scmp.ne.s32.totalorder %s70, %s71
    %p83 = scmp.eq.s32.totalorder %s19, 1
    %p84 = por %p82, %p83
    %p86 = scmp.ne.s32.totalorder %s71, %s85
    %p87 = scmp.eq.s32.totalorder %s19, 0
    %p88 = por %p86, %p87
    %s90 = sadd.s32 %s89, 1
    %p93 = scmp.eq.s32.totalorder %s13, 1
    %p94 = scmp.ne.s32.totalorder %s89, %s91
    %p95 = scmp.eq.s32.totalorder %s13, 0
    %p96 = por %p94, %p95
    %p97 = scmp.ne.s32.totalorder %s89, %s91
    %p98 = scmp.eq.s32.totalorder %s18, 1
    %p99 = por %p97, %p98
    %p100 = scmp.ne.s32.totalorder %s91, %s92
    %p101 = scmp.eq.s32.totalorder %s18, 0
    %p102 = por %p100, %p101
    %p103 = scmp.ne.s32.totalorder %s91, %s92
    %p104 = scmp.eq.s32.totalorder %s19, 1
    %p105 = por %p103, %p104
    %p107 = scmp.ne.s32.totalorder %s92, %s106
    %p108 = scmp.eq.s32.totalorder %s19, 0
    %p109 = por %p107, %p108
    %s111 = sadd.s32 %s110, 1
    %p114 = scmp.eq.s32.totalorder %s13, 1
    %p115 = scmp.ne.s32.totalorder %s110, %s112
    %p116 = scmp.eq.s32.totalorder %s13, 0
    %p117 = por %p115, %p116
    %p118 = scmp.ne.s32.totalorder %s110, %s112
    %p119 = scmp.eq.s32.totalorder %s18, 1
    %p120 = por %p118, %p119
    %p121 = scmp.ne.s32.totalorder %s112, %s113
    %p122 = scmp.eq.s32.totalorder %s18, 0
    %p123 = por %p121, %p122
    %p124 = scmp.ne.s32.totalorder %s112, %s113
    %p125 = scmp.eq.s32.totalorder %s19, 1
    %p126 = por %p124, %p125
    %p128 = scmp.ne.s32.totalorder %s113, %s127
    %p129 = scmp.eq.s32.totalorder %s19, 0
    %p130 = por %p128, %p129
    %s131 = ssub.s32 %s13, %s20
    %p132 = scmp.eq.s32.totalorder %s131, 0
    %s134 = sadd.s32 %s133, 1
    %s135 = scalar_select %p132, %s133, %s134
    %p138 = pneg %p132
    %p139 = scmp.eq.s32.totalorder %s13, 1
    %p140 = por %p138, %p139
    %p141 = scmp.ne.s32.totalorder %s133, %s136
    %p142 = scmp.eq.s32.totalorder %s13, 0
    %p143 = por %p141, %p142
    %p144 = scmp.ne.s32.totalorder %s133, %s136
    %p145 = scmp.eq.s32.totalorder %s18, 1
    %p146 = por %p144, %p145
    %p147 = scmp.ne.s32.totalorder %s136, %s137
    %p148 = scmp.eq.s32.totalorder %s18, 0
    %p149 = por %p147, %p148
    %p150 = scmp.ne.s32.totalorder %s136, %s137
    %p151 = scmp.eq.s32.totalorder %s19, 1
    %p152 = por %p150, %p151
    %p154 = scmp.ne.s32.totalorder %s137, %s153
    %p155 = scmp.eq.s32.totalorder %s19, 0
    %p156 = por %p154, %p155
    %s157 = ssub.s32 %s13, %s20
    %p158 = scmp.eq.s32.totalorder %s157, 0
    %s160 = sadd.s32 %s159, 1
    %s161 = scalar_select %p158, %s159, %s160
    %p164 = pneg %p158
    %p165 = scmp.eq.s32.totalorder %s13, 1
    %p166 = por %p164, %p165
    %p167 = scmp.ne.s32.totalorder %s159, %s162
    %p168 = scmp.eq.s32.totalorder %s13, 0
    %p169 = por %p167, %p168
    %p170 = scmp.ne.s32.totalorder %s159, %s162
    %p171 = scmp.eq.s32.totalorder %s18, 1
    %p172 = por %p170, %p171
    %p173 = scmp.ne.s32.totalorder %s162, %s163
    %p174 = scmp.eq.s32.totalorder %s18, 0
    %p175 = por %p173, %p174
    %p176 = scmp.ne.s32.totalorder %s162, %s163
    %p177 = scmp.eq.s32.totalorder %s19, 1
    %p178 = por %p176, %p177
    %p180 = scmp.ne.s32.totalorder %s163, %s179
    %p181 = scmp.eq.s32.totalorder %s19, 0
    %p182 = por %p180, %p181
    %p183 = scmp.le.s32.totalorder 1, %s13
    %p184 = scmp.lt.s32.totalorder %s13, 3
    %p185 = pnand %p183, %p184
    %p186 = pneg %p185
    // Predicated region
    $region9: #{tpu_custom_call.1} parent=5 // pred_check
      _
    $region10: #{tpu_custom_call.1} parent=5 // pred_check_branch
      %188 = sbr.rel (%p185) target = $region12
    $region11: #{tpu_custom_call.1} parent=5 // pred_region
      %s189 = ssub.s32 %s13, 1
      // Predicated region
      $region13: #{tpu_custom_call.1} parent=11 // pred_check
        %p190 = pneg %p60
      $region14: #{tpu_custom_call.1} parent=11 // pred_check_branch
        %192 = sbr.rel (%p190) target = $region16
      $region15: #{tpu_custom_call.1} parent=11 // pred_region
        _
      $region16: #{tpu_custom_call.1} parent=11 // pred_fallthru
        _
      // Predicated region
      $region17: #{tpu_custom_call.1} parent=11 // pred_check
        %p193 = pneg %p81
      $region18: #{tpu_custom_call.1} parent=11 // pred_check_branch
        %195 = sbr.rel (%p193) target = $region20
      $region19: #{tpu_custom_call.1} parent=11 // pred_region
        _
      $region20: #{tpu_custom_call.1} parent=11 // pred_fallthru
        _
      // Predicated region
      $region21: #{tpu_custom_call.1} parent=11 // pred_check
        %p196 = pneg %p102
      $region22: #{tpu_custom_call.1} parent=11 // pred_check_branch
        %198 = sbr.rel (%p196) target = $region24
      $region23: #{tpu_custom_call.1} parent=11 // pred_region
        _
      $region24: #{tpu_custom_call.1} parent=11 // pred_fallthru
        _
      // Predicated region
      $region25: #{tpu_custom_call.1} parent=11 // pred_check
        %p199 = pneg %p123
      $region26: #{tpu_custom_call.1} parent=11 // pred_check_branch
        %201 = sbr.rel (%p199) target = $region28
      $region27: #{tpu_custom_call.1} parent=11 // pred_region
        _
      $region28: #{tpu_custom_call.1} parent=11 // pred_fallthru
        _
    $region12: #{tpu_custom_call.1} parent=5 // pred_fallthru
      _
    %p202 = scmp.lt.s32.totalorder %s13, 2
    // Predicated region
    $region29: #{tpu_custom_call.1} parent=5 // pred_check
      %p203 = pneg %p202
    $region30: #{tpu_custom_call.1} parent=5 // pred_check_branch
      %205 = sbr.rel (%p203) target = $region32
    $region31: #{tpu_custom_call.1} parent=5 // pred_region
      // Predicated region
      $region33: #{tpu_custom_call.1} parent=31 // pred_check
        %p206 = pneg %p33
      $region34: #{tpu_custom_call.1} parent=31 // pred_check_branch
        %208 = sbr.rel (%p206) target = $region36
      $region35: #{tpu_custom_call.1} parent=31 // pred_region
        %s209 = smul.u32 8, %s13
        %p210 = scmp.lt.s32.totalorder %s209, 15
        %s211 = scalar_select %p210, %s209, 15
        %s212 = smul.addr %s211, 8
        %s213 = scalar_lea.vmem %s0, %s212
        %s214 = smul.u32 8, %s13
      $region36: #{tpu_custom_call.1} parent=31 // pred_fallthru
        _
    $region32: #{tpu_custom_call.1} parent=5 // pred_fallthru
      _
    %p215 = scmp.le.s32.totalorder 1, %s13
    %p216 = scmp.lt.s32.totalorder %s13, 3
    %p217 = pnand %p215, %p216
    %p218 = pneg %p217
    // Predicated region
    $region37: #{tpu_custom_call.1} parent=5 // pred_check
      _
    $region38: #{tpu_custom_call.1} parent=5 // pred_check_branch
      %220 = sbr.rel (%p217) target = $region40
    $region39: #{tpu_custom_call.1} parent=5 // pred_region
      %s221 = ssub.s32 %s13, 1
      %s222 = smul.u32 8, %s18
      %p223 = scmp.lt.s32.totalorder %s222, 15
      %s224 = scalar_select %p223, %s222, 15
      %s225 = smul.addr %s224, 8
      %s226 = scalar_lea.vmem %s0, %s225
      %p227 = pneg %p39
      %p228 = pneg %p36
      %p229 = pneg %p60
      %p230 = pneg %p57
      %p231 = pneg %p81
      %p232 = pneg %p78
      %p233 = pneg %p102
      %p234 = pneg %p99
      %p235 = pneg %p123
      %p236 = pneg %p120
      %p237 = pneg %p149
      %p238 = pneg %p146
      %s239 = smul.u32 8, %s18
      %p240 = scmp.lt.s32.totalorder %s239, 15
      %s241 = scalar_select %p240, %s239, 15
      %s242 = smul.addr %s241, 8
      %s243 = scalar_lea.vmem %s5, %s242
      %p244 = pneg %p175
      %p245 = pneg %p172
      %s246 = smul.u32 8, %s18
      %p247 = scmp.lt.s32.totalorder %s246, 15
      %s248 = scalar_select %p247, %s246, 15
      %s249 = smul.addr %s248, 8
      %s250 = scalar_lea.vmem %s6, %s249
      %s251 = smul.u32 8, %s18
      %p252 = scmp.lt.s32.totalorder %s251, 15
      %s253 = scalar_select %p252, %s251, 15
      %s254 = smul.addr %s253, 8
      %s255 = scalar_lea.vmem %s0, %s254
      %s256 = smul.u32 8, %s18
      %s257 = smul.u32 8, %s18
      %p258 = scmp.lt.s32.totalorder %s257, 15
      %s259 = scalar_select %p258, %s257, 15
      %s260 = smul.addr %s259, 8
      %s261 = scalar_lea.vmem %s5, %s260
      %s262 = smul.u32 8, %s18
      %s263 = smul.u32 8, %s18
      %p264 = scmp.lt.s32.totalorder %s263, 15
      %s265 = scalar_select %p264, %s263, 15
      %s266 = smul.addr %s265, 8
      %s267 = scalar_lea.vmem %s6, %s266
      %s268 = smul.u32 8, %s18
      %v270 = vld [vmem:[%s255] sm:$0xff]
      %v271 = vld [vmem:[%s255 + $0x8] sm:$0xff]
      %v272 = vld [vmem:[%s255 + $0x10] sm:$0xff]
      %v273 = vld [vmem:[%s255 + $0x18] sm:$0xff]
      %v274 = vld [vmem:[%s255 + $0x20] sm:$0xff]
      %v275 = vld [vmem:[%s255 + $0x28] sm:$0xff]
      %v276 = vld [vmem:[%s255 + $0x30] sm:$0xff]
      %v277 = vld [vmem:[%s255 + $0x38] sm:$0xff]
      %v278 = vpack.c.bf16 %v271, %v270
      %v279 = vpack.c.bf16 %v273, %v272
      %v280 = vpack.c.bf16 %v275, %v274
      %v281 = vpack.c.bf16 %v277, %v276
      %v282 = vld [vmem:[%s1] sm:$0xf]
      %v283 = vld [vmem:[%s1 + $0x4] sm:$0xf]
      %v284 = vld [vmem:[%s1 + $0x8] sm:$0xf]
      %v285 = vld [vmem:[%s1 + $0xc] sm:$0xf]
      %v286 = vld [vmem:[%s2] sm:$0xf]
      %v287 = vld [vmem:[%s2 + $0x4] sm:$0xf]
      %v288 = vld [vmem:[%s2 + $0x8] sm:$0xf]
      %v289 = vld [vmem:[%s2 + $0xc] sm:$0xf]
      %v290 = vld [vmem:[%s3] sm:$0x1]
      %v292 = vlaneseq
      %v293 = vshrl.u32 %v292, 7
      %v294 = vsub.s32 0, %v293
      %v295 = vrot.slane %v290, %v294
      %v301 = vunpack.c.l.b16 %v282
      %v302 = vunpack.c.l.b16 %v283
      %v303 = vunpack.c.l.b16 %v284
      %v304 = vunpack.c.l.b16 %v285
      %v305 = vpack.c.b16 %v302, %v301
      %v306 = vpack.c.b16 %v304, %v303
      %vm309 = vcmask 261120
      %v311 = vsel %vm309, %v278, 0
      %v314 = vsel %vm309, %v279, 0
      %v317 = vsel %vm309, %v280, 0
      %v320 = vsel %vm309, %v281, 0
      %322 = vmatprep.subr.bf16.mxu0 0
      %323 = vmatpush1.bf16.msra.mxu0 %v305
      %324 = vmatprep.subr.bf16.mxu0 0
      %325 = vmatpush1.bf16.msra.mxu0 %v306
      %326 = vmatprep.subr.bf16.mxu0 0
      %327 = vmatpush1.bf16.msra.mxu0 0
      %328 = vmatprep.subr.bf16.mxu0 0
      %329 = vmatpush1.bf16.msra.mxu0 0
      %330 = vmatprep.subr.bf16.mxu0 0
      %331 = vmatpush1.bf16.msra.mxu0 0
      %332 = vmatprep.subr.bf16.mxu0 0
      %333 = vmatpush1.bf16.msra.mxu0 0
      %334 = vmatprep.subr.bf16.mxu0 0
      %335 = vmatpush1.bf16.msra.mxu0 0
      %336 = vmatprep.subr.bf16.mxu0 0
      %337 = vmatpush1.bf16.msra.mxu0 0
      %338 = vmatprep.subr.bf16.mxu0 0
      %339 = vmatpush1.bf16.msra.mxu0 0
      %340 = vmatprep.subr.bf16.mxu0 0
      %341 = vmatpush1.bf16.msra.mxu0 0
      %342 = vmatprep.subr.bf16.mxu0 0
      %343 = vmatpush1.bf16.msra.mxu0 0
      %344 = vmatprep.subr.bf16.mxu0 0
      %345 = vmatpush1.bf16.msra.mxu0 0
      %346 = vmatprep.subr.bf16.mxu0 0
      %347 = vmatpush1.bf16.msra.mxu0 0
      %348 = vmatprep.subr.bf16.mxu0 0
      %349 = vmatpush1.bf16.msra.mxu0 0
      %350 = vmatprep.subr.bf16.mxu0 0
      %351 = vmatpush1.bf16.msra.mxu0 0
      %352 = vmatprep.subr.bf16.mxu0 0
      %353 = vmatpush1.bf16.msra.mxu0 0
      %354 = vmatprep.mubr.bf16.mxu0 0
      %355 = vmatmul.mubr.bf16.gmra.mrb[0].mxu0 %v311
      %v356 = vpop.f32.mrb[0].mxu0
      %v357 = vadd.f32 %v295, %v356
      %v358 = vpop.f32.mrb[0].mxu0
      %v359 = vpop.f32.mrb[0].mxu0
      %v360 = vadd.f32 %v295, %v359
      %v361 = vpop.f32.mrb[0].mxu0
      %362 = vmatprep.mubr.bf16.mxu0 0
      %363 = vmatmul.mubr.bf16.gmra.mrb[0].mxu0 %v314
      %v364 = vpop.f32.mrb[0].mxu0
      %v365 = vadd.f32 %v295, %v364
      %v366 = vpop.f32.mrb[0].mxu0
      %v367 = vpop.f32.mrb[0].mxu0
      %v368 = vadd.f32 %v295, %v367
      %v369 = vpop.f32.mrb[0].mxu0
      %370 = vmatprep.mubr.bf16.mxu0 0
      %371 = vmatmul.mubr.bf16.gmra.mrb[0].mxu0 %v317
      %v372 = vpop.f32.mrb[0].mxu0
      %v373 = vadd.f32 %v295, %v372
      %v374 = vpop.f32.mrb[0].mxu0
      %v375 = vpop.f32.mrb[0].mxu0
      %v376 = vadd.f32 %v295, %v375
      %v377 = vpop.f32.mrb[0].mxu0
      %378 = vmatprep.mubr.bf16.mxu0 0
      %379 = vmatmul.mubr.bf16.gmra.mrb[0].mxu0 %v320
      %v380 = vpop.f32.mrb[0].mxu0
      %v381 = vadd.f32 %v295, %v380
      %v382 = vpop.f32.mrb[0].mxu0
      %v383 = vpop.f32.mrb[0].mxu0
      %v384 = vadd.f32 %v295, %v383
      %v385 = vpop.f32.mrb[0].mxu0
      %386 = vdwg.mxu0
      %387 = vst.msk [vmem:[%s261] sm:$0xff] %vm309, %v357
      %388 = vst.msk [vmem:[%s261 + $0x8] sm:$0xff] %vm309, %v360
      %389 = vst.msk [vmem:[%s261 + $0x10] sm:$0xff] %vm309, %v365
      %390 = vst.msk [vmem:[%s261 + $0x18] sm:$0xff] %vm309, %v368
      %391 = vst.msk [vmem:[%s261 + $0x20] sm:$0xff] %vm309, %v373
      %392 = vst.msk [vmem:[%s261 + $0x28] sm:$0xff] %vm309, %v376
      %393 = vst.msk [vmem:[%s261 + $0x30] sm:$0xff] %vm309, %v381
      %394 = vst.msk [vmem:[%s261 + $0x38] sm:$0xff] %vm309, %v384
      %v395 = vld [vmem:[%s4] sm:$0x1]
      %v397 = vlaneseq
      %v398 = vshrl.u32 %v397, 7
      %v399 = vsub.s32 0, %v398
      %v400 = vrot.slane %v395, %v399
      %v406 = vunpack.c.l.b16 %v286
      %v407 = vunpack.c.l.b16 %v287
      %v408 = vunpack.c.l.b16 %v288
      %v409 = vunpack.c.l.b16 %v289
      %v410 = vpack.c.b16 %v407, %v406
      %v411 = vpack.c.b16 %v409, %v408
      %414 = vmatprep.subr.bf16.mxu0 0
      %415 = vmatpush1.bf16.msra.mxu0 %v410
      %416 = vmatprep.subr.bf16.mxu0 0
      %417 = vmatpush1.bf16.msra.mxu0 %v411
      %418 = vmatprep.subr.bf16.mxu0 0
      %419 = vmatpush1.bf16.msra.mxu0 0
      %420 = vmatprep.subr.bf16.mxu0 0
      %421 = vmatpush1.bf16.msra.mxu0 0
      %422 = vmatprep.subr.bf16.mxu0 0
      %423 = vmatpush1.bf16.msra.mxu0 0
      %424 = vmatprep.subr.bf16.mxu0 0
      %425 = vmatpush1.bf16.msra.mxu0 0
      %426 = vmatprep.subr.bf16.mxu0 0
      %427 = vmatpush1.bf16.msra.mxu0 0
      %428 = vmatprep.subr.bf16.mxu0 0
      %429 = vmatpush1.bf16.msra.mxu0 0
      %430 = vmatprep.subr.bf16.mxu0 0
      %431 = vmatpush1.bf16.msra.mxu0 0
      %432 = vmatprep.subr.bf16.mxu0 0
      %433 = vmatpush1.bf16.msra.mxu0 0
      %434 = vmatprep.subr.bf16.mxu0 0
      %435 = vmatpush1.bf16.msra.mxu0 0
      %436 = vmatprep.subr.bf16.mxu0 0
      %437 = vmatpush1.bf16.msra.mxu0 0
      %438 = vmatprep.subr.bf16.mxu0 0
      %439 = vmatpush1.bf16.msra.mxu0 0
      %440 = vmatprep.subr.bf16.mxu0 0
      %441 = vmatpush1.bf16.msra.mxu0 0
      %442 = vmatprep.subr.bf16.mxu0 0
      %443 = vmatpush1.bf16.msra.mxu0 0
      %444 = vmatprep.subr.bf16.mxu0 0
      %445 = vmatpush1.bf16.msra.mxu0 0
      %446 = vmatprep.mubr.bf16.mxu0 0
      %447 = vmatmul.mubr.bf16.gmra.mrb[0].mxu0 %v311
      %v448 = vpop.f32.mrb[0].mxu0
      %v449 = vadd.f32 %v400, %v448
      %v450 = vpop.f32.mrb[0].mxu0
      %v451 = vpop.f32.mrb[0].mxu0
      %v452 = vadd.f32 %v400, %v451
      %v453 = vpop.f32.mrb[0].mxu0
      %454 = vmatprep.mubr.bf16.mxu0 0
      %455 = vmatmul.mubr.bf16.gmra.mrb[0].mxu0 %v314
      %v456 = vpop.f32.mrb[0].mxu0
      %v457 = vadd.f32 %v400, %v456
      %v458 = vpop.f32.mrb[0].mxu0
      %v459 = vpop.f32.mrb[0].mxu0
      %v460 = vadd.f32 %v400, %v459
      %v461 = vpop.f32.mrb[0].mxu0
      %462 = vmatprep.mubr.bf16.mxu0 0
      %463 = vmatmul.mubr.bf16.gmra.mrb[0].mxu0 %v317
      %v464 = vpop.f32.mrb[0].mxu0
      %v465 = vadd.f32 %v400, %v464
      %v466 = vpop.f32.mrb[0].mxu0
      %v467 = vpop.f32.mrb[0].mxu0
      %v468 = vadd.f32 %v400, %v467
      %v469 = vpop.f32.mrb[0].mxu0
      %470 = vmatprep.mubr.bf16.mxu0 0
      %471 = vmatmul.mubr.bf16.gmra.mrb[0].mxu0 %v320
      %v472 = vpop.f32.mrb[0].mxu0
      %v473 = vadd.f32 %v400, %v472
      %v474 = vpop.f32.mrb[0].mxu0
      %v475 = vpop.f32.mrb[0].mxu0
      %v476 = vadd.f32 %v400, %v475
      %v477 = vpop.f32.mrb[0].mxu0
      %478 = vdwg.mxu0
      %vm479 = vcmask 523264
      %480 = vst.msk [vmem:[%s267] sm:$0xff] %vm479, %v449
      %481 = vst.msk [vmem:[%s267 + $0x8] sm:$0xff] %vm479, %v452
      %482 = vst.msk [vmem:[%s267 + $0x10] sm:$0xff] %vm479, %v457
      %483 = vst.msk [vmem:[%s267 + $0x18] sm:$0xff] %vm479, %v460
      %484 = vst.msk [vmem:[%s267 + $0x20] sm:$0xff] %vm479, %v465
      %485 = vst.msk [vmem:[%s267 + $0x28] sm:$0xff] %vm479, %v468
      %486 = vst.msk [vmem:[%s267 + $0x30] sm:$0xff] %vm479, %v473
      %487 = vst.msk [vmem:[%s267 + $0x38] sm:$0xff] %vm479, %v476
      %s488 = smul.u32 8, %s18
      %p489 = scmp.lt.s32.totalorder %s488, 15
      %s490 = scalar_select %p489, %s488, 15
      %s491 = smul.addr %s490, 8
      %s492 = scalar_lea.vmem %s5, %s491
      %s493 = smul.u32 8, %s18
      %p494 = scmp.lt.s32.totalorder %s493, 15
      %s495 = scalar_select %p494, %s493, 15
      %s496 = smul.addr %s495, 8
      %s497 = scalar_lea.vmem %s6, %s496
      // Predicated region
      $region41: #{tpu_custom_call.1} parent=39 // pred_check
        %p498 = pneg %p146
      $region42: #{tpu_custom_call.1} parent=39 // pred_check_branch
        %500 = sbr.rel (%p498) target = $region44
      $region43: #{tpu_custom_call.1} parent=39 // pred_region
        %s501 = smul.u32 8, %s18
      $region44: #{tpu_custom_call.1} parent=39 // pred_fallthru
        _
      // Predicated region
      $region45: #{tpu_custom_call.1} parent=39 // pred_check
        %p502 = pneg %p172
      $region46: #{tpu_custom_call.1} parent=39 // pred_check_branch
        %504 = sbr.rel (%p502) target = $region48
      $region47: #{tpu_custom_call.1} parent=39 // pred_region
        %s505 = smul.u32 8, %s18
      $region48: #{tpu_custom_call.1} parent=39 // pred_fallthru
        _
    $region40: #{tpu_custom_call.1} parent=5 // pred_fallthru
      _
    %p506 = scmp.le.s32.totalorder 2, %s13
    // Predicated region
    $region49: #{tpu_custom_call.1} parent=5 // pred_check
      %p507 = pneg %p506
    $region50: #{tpu_custom_call.1} parent=5 // pred_check_branch
      %509 = sbr.rel (%p507) target = $region52
    $region51: #{tpu_custom_call.1} parent=5 // pred_region
      %s510 = ssub.s32 %s13, 2
      // Predicated region
      $region53: #{tpu_custom_call.1} parent=51 // pred_check
        %p511 = pneg %p152
      $region54: #{tpu_custom_call.1} parent=51 // pred_check_branch
        %513 = sbr.rel (%p511) target = $region56
      $region55: #{tpu_custom_call.1} parent=51 // pred_region
        %s514 = smul.u32 8, %s19
        %p515 = scmp.lt.s32.totalorder %s514, 15
        %s516 = scalar_select %p515, %s514, 15
        %s517 = smul.addr %s516, 8
        %s518 = scalar_lea.vmem %s5, %s517
      $region56: #{tpu_custom_call.1} parent=51 // pred_fallthru
        _
      // Predicated region
      $region57: #{tpu_custom_call.1} parent=51 // pred_check
        %p519 = pneg %p178
      $region58: #{tpu_custom_call.1} parent=51 // pred_check_branch
        %521 = sbr.rel (%p519) target = $region60
      $region59: #{tpu_custom_call.1} parent=51 // pred_region
        %s522 = smul.u32 8, %s19
        %p523 = scmp.lt.s32.totalorder %s522, 15
        %s524 = scalar_select %p523, %s522, 15
        %s525 = smul.addr %s524, 8
        %s526 = scalar_lea.vmem %s6, %s525
      $region60: #{tpu_custom_call.1} parent=51 // pred_fallthru
        _
    $region52: #{tpu_custom_call.1} parent=5 // pred_fallthru
      _
  $region6: #{tpu_custom_call.1} parent=0 // loop_footer
    %s17 = sadd.s32 1, %s13
  $region7: #{tpu_custom_call.1} parent=0 // loop_footer_branch
    %12 = sbr.rel target = $region3
  $region8: #{tpu_custom_call.1} parent=0 // loop_exit
    _

</llo_original>
